<compile_context>
chip_gen: v5e
topology: v5e:2x2
jax: 0.10.0
libtpu: 0.0.40
codegen_flags: <defaults>
</compile_context>

<pallas_src>
import functools

import numpy as np
import jax
import jax.numpy as jnp
from jax.experimental import pallas as pl
from jax.experimental.pallas import tpu as pltpu

# Static eye-landmark indices (compile-time Python constants).
_EYE_UP = (37, 38, 43, 44)
_EYE_BOTTOM = (41, 40, 47, 46)
_WIN_LO = 37                      # first landmark of the contiguous window
_WIN_HI = 47                      # last landmark of the window (inclusive)
_WIN_W = (_WIN_HI - _WIN_LO + 1) * 2   # 11 landmarks x (x, y) = 22 columns
_NUM_PAIRS = 4

_MAX_BATCH_TILE = 8192            # rows/tile (~2.9 MB double-buffered f32)


def _selection_matrices():
    """+1/-1 selection: win(B, 22) @ S -> per-pair (up - bottom) coordinate."""
    sx = np.zeros((_WIN_W, _NUM_PAIRS), np.float32)
    sy = np.zeros((_WIN_W, _NUM_PAIRS), np.float32)
    for k, (up, bot) in enumerate(zip(_EYE_UP, _EYE_BOTTOM)):
        sx[(up - _WIN_LO) * 2 + 0, k] = 1.0
        sx[(bot - _WIN_LO) * 2 + 0, k] = -1.0
        sy[(up - _WIN_LO) * 2 + 1, k] = 1.0
        sy[(bot - _WIN_LO) * 2 + 1, k] = -1.0
    return jnp.asarray(sx), jnp.asarray(sy)


def _eye_distance_loss_kernel(pred_ref, gt_ref, sx_ref, sy_ref, out_ref, *,
                              batch, block_b):
    """One batch tile -> one (8, 128) partial-sum output block."""
    i = pl.program_id(0)

    # Cast in-VMEM (no-op for f32 inputs, upcast for bf16 inputs).
    pred = pred_ref[...].astype(jnp.float32)          # (block_b, 22)
    gt = gt_ref[...].astype(jnp.float32)
    sx = sx_ref[...]                                   # (22, 4)
    sy = sy_ref[...]

    # MXU selection matmuls: all 4 eye pairs lane-stacked at once.
    pdx = jnp.dot(pred, sx, preferred_element_type=jnp.float32)   # (block_b, 4)
    pdy = jnp.dot(pred, sy, preferred_element_type=jnp.float32)
    gdx = jnp.dot(gt, sx, preferred_element_type=jnp.float32)
    gdy = jnp.dot(gt, sy, preferred_element_type=jnp.float32)

    p_dist = jnp.sqrt(pdx * pdx + pdy * pdy)           # (block_b, 4)
    g_dist = jnp.sqrt(gdx * gdx + gdy * gdy)
    diff = jnp.abs(p_dist - g_dist)                    # (block_b, 4)

    # Independent per-tile partial: zero the block, write 4 lanes of sums.
    out_ref[...] = jnp.zeros_like(out_ref)

    if batch % block_b != 0:
        # Only the final tile carries padded (garbage) rows; gate the
        # iota+where masking to that single grid step.
        last = pl.num_programs(0) - 1

        @pl.when(i < last)
        def _dense():
            out_ref[0:1, 0:_NUM_PAIRS] = jnp.sum(diff, axis=0, keepdims=True)

        @pl.when(i == last)
        def _ragged():
            rows = jax.lax.broadcasted_iota(jnp.int32, diff.shape, 0)
            valid = batch - i * block_b
            masked = jnp.where(rows < valid, diff, 0.0)
            out_ref[0:1, 0:_NUM_PAIRS] = jnp.sum(masked, axis=0, keepdims=True)
    else:
        out_ref[0:1, 0:_NUM_PAIRS] = jnp.sum(diff, axis=0, keepdims=True)


def eye_distance_loss(predict_landmark, landmark_gt, eyed_loss_weight=1.0):
    """Pallas implementation of EyeDistanceLoss.forward (scalar loss)."""
    B, L, C = predict_landmark.shape
    assert L > max(_EYE_UP + _EYE_BOTTOM) and C >= 2

    # Contiguous landmark window 37..47, (x, y) only -> lane-friendly (B, 22).
    pred_win = predict_landmark[:, _WIN_LO:_WIN_HI + 1, :2].reshape(B, _WIN_W)
    gt_win = landmark_gt[:, _WIN_LO:_WIN_HI + 1, :2].reshape(B, _WIN_W)
    sx, sy = _selection_matrices()

    block_b = B if B <= _MAX_BATCH_TILE else _MAX_BATCH_TILE
    num_tiles = pl.cdiv(B, block_b)

    kernel = functools.partial(
        _eye_distance_loss_kernel, batch=B, block_b=block_b)

    partials = pl.pallas_call(
        kernel,
        out_shape=jax.ShapeDtypeStruct((num_tiles * 8, 128), jnp.float32),
        grid=(num_tiles,),
        in_specs=[
            pl.BlockSpec((block_b, _WIN_W), lambda i: (i, 0)),
            pl.BlockSpec((block_b, _WIN_W), lambda i: (i, 0)),
            pl.BlockSpec((_WIN_W, _NUM_PAIRS), lambda i: (0, 0)),
            pl.BlockSpec((_WIN_W, _NUM_PAIRS), lambda i: (0, 0)),
        ],
        out_specs=pl.BlockSpec((8, 128), lambda i: (i, 0)),
        compiler_params=pltpu.CompilerParams(
            # Independent per-tile partials -> megacore-shardable on v7x.
            dimension_semantics=("parallel",)),
    )(pred_win, gt_win, sx, sy)

    # Tiny final reduction + L1 'mean' scaling: weight / (B * num_pairs).
    scale = jnp.float32(eyed_loss_weight) / jnp.float32(B * _NUM_PAIRS)
    return jnp.sum(partials) * scale


def _reference(predict_landmark, landmark_gt, eyed_loss_weight=1.0):
    # Pure-JAX reference mirroring the PyTorch module, for a sanity check.
    def eye_dis(lm):
        up = lm[:, list(_EYE_UP), :2]
        bot = lm[:, list(_EYE_BOTTOM), :2]
        return jnp.sqrt(jnp.sum((up - bot) ** 2, axis=2))

    pred_eyed = eye_dis(predict_landmark.astype(jnp.float32))
    gt_eyed = eye_dis(landmark_gt.astype(jnp.float32))
    return jnp.mean(jnp.abs(pred_eyed - gt_eyed)) * eyed_loss_weight


if __name__ == "__main__":
    key = jax.random.PRNGKey(0)
    k0, k1 = jax.random.split(key)
    # 68-point facial landmarks (indices up to 47 are used), (x, y, z) coords.
    B, L, C = 2, 68, 3
    predict_landmark = jax.random.normal(k0, (B, L, C), dtype=jnp.float32)
    landmark_gt = jax.random.normal(k1, (B, L, C), dtype=jnp.float32)

    loss = eye_distance_loss(predict_landmark, landmark_gt)
    loss = jax.block_until_ready(loss)

    ref = jax.block_until_ready(_reference(predict_landmark, landmark_gt))
    assert jnp.allclose(loss, ref, rtol=1e-5, atol=1e-5), (loss, ref)

    print("KERNEL_OK")
</pallas_src>

<mosaic_0001>
module attributes {stable_mosaic.version = 11 : i64} {
  func.func @_eye_distance_loss_kernel(%arg0: i32, %arg1: memref<2x22xf32, #tpu.memory_space<vmem>>, %arg2: memref<2x22xf32, #tpu.memory_space<vmem>>, %arg3: memref<22x4xf32, #tpu.memory_space<vmem>>, %arg4: memref<22x4xf32, #tpu.memory_space<vmem>>, %arg5: memref<8x128xf32, #tpu.memory_space<vmem>>) attributes {dimension_semantics = [#tpu.dimension_semantics<parallel>], iteration_bounds = array<i64: 1>, scalar_prefetch = 0 : i64, scratch_operands = 0 : i64, tpu.core_type = #tpu.core_type<tc>, window_params = [{transform_indices = @transform_0, window_bounds = array<i64: 2, 22>}, {transform_indices = @transform_1, window_bounds = array<i64: 2, 22>}, {pipeline_mode = #tpu.pipeline_mode<synchronous>, transform_indices = @transform_2, window_bounds = array<i64: 22, 4>}, {pipeline_mode = #tpu.pipeline_mode<synchronous>, transform_indices = @transform_3, window_bounds = array<i64: 22, 4>}, {transform_indices = @transform_4, window_bounds = array<i64: 8, 128>}]} {
    %c0 = arith.constant 0 : index
    %c0_0 = arith.constant 0 : index
    %0 = vector.load %arg1[%c0, %c0_0] : memref<2x22xf32, #tpu.memory_space<vmem>>, vector<2x22xf32>
    %c0_1 = arith.constant 0 : index
    %c0_2 = arith.constant 0 : index
    %1 = vector.load %arg2[%c0_1, %c0_2] : memref<2x22xf32, #tpu.memory_space<vmem>>, vector<2x22xf32>
    %c0_3 = arith.constant 0 : index
    %c0_4 = arith.constant 0 : index
    %2 = vector.load %arg3[%c0_3, %c0_4] : memref<22x4xf32, #tpu.memory_space<vmem>>, vector<22x4xf32>
    %c0_5 = arith.constant 0 : index
    %c0_6 = arith.constant 0 : index
    %3 = vector.load %arg4[%c0_5, %c0_6] : memref<22x4xf32, #tpu.memory_space<vmem>>, vector<22x4xf32>
    %cst = arith.constant dense<0.000000e+00> : vector<2x4xf32>
    %4 = tpu.matmul %0, %2, %cst {dimension_numbers = #tpu.dot_dimension_numbers<[1], [0], [0], [1], [0, 0, 1, 1], [], []>} : vector<2x22xf32>, vector<22x4xf32>, vector<2x4xf32> -> vector<2x4xf32>
    %cst_7 = arith.constant dense<0.000000e+00> : vector<2x4xf32>
    %5 = tpu.matmul %0, %3, %cst_7 {dimension_numbers = #tpu.dot_dimension_numbers<[1], [0], [0], [1], [0, 0, 1, 1], [], []>} : vector<2x22xf32>, vector<22x4xf32>, vector<2x4xf32> -> vector<2x4xf32>
    %cst_8 = arith.constant dense<0.000000e+00> : vector<2x4xf32>
    %6 = tpu.matmul %1, %2, %cst_8 {dimension_numbers = #tpu.dot_dimension_numbers<[1], [0], [0], [1], [0, 0, 1, 1], [], []>} : vector<2x22xf32>, vector<22x4xf32>, vector<2x4xf32> -> vector<2x4xf32>
    %cst_9 = arith.constant dense<0.000000e+00> : vector<2x4xf32>
    %7 = tpu.matmul %1, %3, %cst_9 {dimension_numbers = #tpu.dot_dimension_numbers<[1], [0], [0], [1], [0, 0, 1, 1], [], []>} : vector<2x22xf32>, vector<22x4xf32>, vector<2x4xf32> -> vector<2x4xf32>
    %8 = arith.mulf %4, %4 : vector<2x4xf32>
    %9 = arith.mulf %5, %5 : vector<2x4xf32>
    %10 = arith.addf %8, %9 : vector<2x4xf32>
    %11 = math.sqrt %10 : vector<2x4xf32>
    %12 = arith.mulf %6, %6 : vector<2x4xf32>
    %13 = arith.mulf %7, %7 : vector<2x4xf32>
    %14 = arith.addf %12, %13 : vector<2x4xf32>
    %15 = math.sqrt %14 : vector<2x4xf32>
    %16 = arith.subf %11, %15 : vector<2x4xf32>
    %17 = math.absf %16 : vector<2x4xf32>
    %cst_10 = arith.constant 0.000000e+00 : f32
    %18 = vector.broadcast %cst_10 : f32 to vector<8x128xf32>
    %c0_11 = arith.constant 0 : index
    %c0_12 = arith.constant 0 : index
    %19 = vector.load %arg5[%c0_11, %c0_12] : memref<8x128xf32, #tpu.memory_space<vmem>>, vector<8x128xf32>
    tpu.vector_store %arg5[%c0_11, %c0_12], %18 {strides = array<i32>} : memref<8x128xf32, #tpu.memory_space<vmem>>, vector<8x128xf32>,
    %cst_13 = arith.constant dense<0.000000e+00> : vector<4xf32>
    %20 = vector.multi_reduction <add>, %17, %cst_13 [0] : vector<2x4xf32> to vector<4xf32>
    %21 = vector.shape_cast %20 : vector<4xf32> to vector<1x4xf32>
    %c0_14 = arith.constant 0 : index
    %c0_15 = arith.constant 0 : index
    %22 = vector.load %arg5[%c0_14, %c0_15] : memref<8x128xf32, #tpu.memory_space<vmem>>, vector<1x4xf32>
    tpu.vector_store %arg5[%c0_14, %c0_15], %21 {strides = array<i32>} : memref<8x128xf32, #tpu.memory_space<vmem>>, vector<1x4xf32>,
    return
  }
  func.func @transform_0(%arg0: i32) -> (i32, i32) {
    %c0_i32 = arith.constant 0 : i32
    %c0_i32_0 = arith.constant 0 : i32
    return %arg0, %c0_i32 : i32, i32
  }
  func.func @transform_1(%arg0: i32) -> (i32, i32) {
    %c0_i32 = arith.constant 0 : i32
    %c0_i32_0 = arith.constant 0 : i32
    return %arg0, %c0_i32 : i32, i32
  }
  func.func @transform_2(%arg0: i32) -> (i32, i32) {
    %c0_i32 = arith.constant 0 : i32
    %c0_i32_0 = arith.constant 0 : i32
    %c0_i32_1 = arith.constant 0 : i32
    return %c0_i32, %c0_i32_0 : i32, i32
  }
  func.func @transform_3(%arg0: i32) -> (i32, i32) {
    %c0_i32 = arith.constant 0 : i32
    %c0_i32_0 = arith.constant 0 : i32
    %c0_i32_1 = arith.constant 0 : i32
    return %c0_i32, %c0_i32_0 : i32, i32
  }
  func.func @transform_4(%arg0: i32) -> (i32, i32) {
    %c0_i32 = arith.constant 0 : i32
    %c0_i32_0 = arith.constant 0 : i32
    return %arg0, %c0_i32 : i32, i32
  }
}

</mosaic_0001>

<llo_original>
// kernel: tpu_custom_call.1
$region0: #{tpu_custom_call.1}
  #allocation0 [shape = 'u32[]', space=smem, size = 0x4, offset = 0x4, fixed_abs, tag = 'smem constant byte address 0x4 - core index']
  #allocation1 [shape = 'u32[72,128]{1,0:T(1,128)}', space=vmem, size = 0x9000, scoped, tag = 'internal scratch']
  %s0 = inlined_call_operand.vmem [shape: f32[2,22], index: 0, kind: input, shape index: {}]
  %s1 = inlined_call_operand.vmem [shape: f32[2,22], index: 1, kind: input, shape index: {}]
  %s2 = inlined_call_operand.vmem [shape: f32[22,4], index: 2, kind: input, shape index: {}]
  %s3 = inlined_call_operand.vmem [shape: f32[22,4], index: 3, kind: input, shape index: {}]
  %s4 = inlined_call_operand.hbm [shape: f32[8,128], index: 4, kind: output, shape index: {}]
  %s5 = sld [smem:[#allocation0]]
  $region26: #{tpu_custom_call.1} parent=0
    _
  %s7 = ssub.s32 1, %s5
  %s8 = scalar_select 0, %s7, %s5
  $region1: #{tpu_custom_call.1} parent=0
    #allocation2 [shape = 'u8[4096]{0}', space=vmem, size = 0x1000, scoped, tag = 'output window, operand 0, single buffered']
    #allocation3 [shape = 's32[1]{0}', space=sflag, size = 0x4, scoped, tag = 'scoped memory for tpu_custom_call.1']
    %9 = vsyncpa [#allocation3], 0
    // Predicated region
    $region2: #{tpu_custom_call.1} parent=1 // pred_check
      _
    $region3: #{tpu_custom_call.1} parent=1 // pred_check_branch
      %11 = sbr.rel (0) target = $region5
    $region4: #{tpu_custom_call.1} parent=1 // pred_region
      _
    $region5: #{tpu_custom_call.1} parent=1 // pred_fallthru
      _
    // Predicated region
    $region6: #{tpu_custom_call.1} parent=1 // pred_check
      _
    $region7: #{tpu_custom_call.1} parent=1 // pred_check_branch
      %13 = sbr.rel (0) target = $region9
    $region8: #{tpu_custom_call.1} parent=1 // pred_region
      _
    $region9: #{tpu_custom_call.1} parent=1 // pred_fallthru
      _
    // Predicated region
    $region10: #{tpu_custom_call.1} parent=1 // pred_check
      _
    $region11: #{tpu_custom_call.1} parent=1 // pred_check_branch
      %15 = sbr.rel (0) target = $region13
    $region12: #{tpu_custom_call.1} parent=1 // pred_region
      _
    $region13: #{tpu_custom_call.1} parent=1 // pred_fallthru
      _
    // Predicated region
    $region14: #{tpu_custom_call.1} parent=1 // pred_check
      _
    $region15: #{tpu_custom_call.1} parent=1 // pred_check_branch
      %17 = sbr.rel (0) target = $region17
    $region16: #{tpu_custom_call.1} parent=1 // pred_region
      _
    $region17: #{tpu_custom_call.1} parent=1 // pred_fallthru
      _
    %v18 = vld [vmem:[%s0] sm:$0x3]
    %v19 = vld [vmem:[%s1] sm:$0x3]
    %v20 = vld [vmem:[%s2] sm:$0xff]
    %v21 = vld [vmem:[%s2 + $0x8] sm:$0xff]
    %v22 = vld [vmem:[%s2 + $0x10] sm:$0x3f]
    %v23 = vld [vmem:[%s3] sm:$0xff]
    %v24 = vld [vmem:[%s3 + $0x8] sm:$0xff]
    %v25 = vld [vmem:[%s3 + $0x10] sm:$0x3f]
    %vm26 = vcmask 179200
    %v28 = vsel %vm26, %v18, 0
    %vm30 = vcmask 1045504
    %v32 = vsel %vm30, %v22, 0
    %34 = vmatpush.msra.mxu0 0.0
    %35 = vmatpush.msra.mxu0 0.0
    %36 = vmatpush.msra.mxu0 0.0
    %37 = vmatpush.msra.mxu0 0.0
    %38 = vmatpush.msra.mxu0 0.0
    %39 = vmatpush.msra.mxu0 0.0
    %40 = vmatpush.msra.mxu0 0.0
    %41 = vmatpush.msra.mxu0 0.0
    %42 = vmatpush.msra.mxu0 0.0
    %43 = vmatpush.msra.mxu0 0.0
    %44 = vmatpush.msra.mxu0 0.0
    %45 = vmatpush.msra.mxu0 0.0
    %46 = vmatpush.msra.mxu0 0.0
    %47 = vmatpush.msra.mxu0 %v32
    %48 = vmatpush.msra.mxu0 %v21
    %49 = vmatpush.msra.mxu0 %v20
    %50 = vmatmul.f32.gmra.mxu0 %v28
    %v51 = vpop.f32.mrf.mxu0
    %v52 = vadd.f32 0.0, %v51
    %53 = vdwg.mxu0
    %v55 = vsel %vm30, %v25, 0
    %57 = vmatpush.msra.mxu0 0.0
    %58 = vmatpush.msra.mxu0 0.0
    %59 = vmatpush.msra.mxu0 0.0
    %60 = vmatpush.msra.mxu0 0.0
    %61 = vmatpush.msra.mxu0 0.0
    %62 = vmatpush.msra.mxu0 0.0
    %63 = vmatpush.msra.mxu0 0.0
    %64 = vmatpush.msra.mxu0 0.0
    %65 = vmatpush.msra.mxu0 0.0
    %66 = vmatpush.msra.mxu0 0.0
    %67 = vmatpush.msra.mxu0 0.0
    %68 = vmatpush.msra.mxu0 0.0
    %69 = vmatpush.msra.mxu0 0.0
    %70 = vmatpush.msra.mxu0 %v55
    %71 = vmatpush.msra.mxu0 %v24
    %72 = vmatpush.msra.mxu0 %v23
    %73 = vmatmul.f32.gmra.mxu0 %v28
    %v74 = vpop.f32.mrf.mxu0
    %v75 = vadd.f32 0.0, %v74
    %76 = vdwg.mxu0
    %v78 = vsel %vm26, %v19, 0
    %80 = vmatpush.msra.mxu0 0.0
    %81 = vmatpush.msra.mxu0 0.0
    %82 = vmatpush.msra.mxu0 0.0
    %83 = vmatpush.msra.mxu0 0.0
    %84 = vmatpush.msra.mxu0 0.0
    %85 = vmatpush.msra.mxu0 0.0
    %86 = vmatpush.msra.mxu0 0.0
    %87 = vmatpush.msra.mxu0 0.0
    %88 = vmatpush.msra.mxu0 0.0
    %89 = vmatpush.msra.mxu0 0.0
    %90 = vmatpush.msra.mxu0 0.0
    %91 = vmatpush.msra.mxu0 0.0
    %92 = vmatpush.msra.mxu0 0.0
    %93 = vmatpush.msra.mxu0 %v32
    %94 = vmatpush.msra.mxu0 %v21
    %95 = vmatpush.msra.mxu0 %v20
    %96 = vmatmul.f32.gmra.mxu0 %v78
    %v97 = vpop.f32.mrf.mxu0
    %v98 = vadd.f32 0.0, %v97
    %99 = vdwg.mxu0
    %100 = vmatpush.msra.mxu0 0.0
    %101 = vmatpush.msra.mxu0 0.0
    %102 = vmatpush.msra.mxu0 0.0
    %103 = vmatpush.msra.mxu0 0.0
    %104 = vmatpush.msra.mxu0 0.0
    %105 = vmatpush.msra.mxu0 0.0
    %106 = vmatpush.msra.mxu0 0.0
    %107 = vmatpush.msra.mxu0 0.0
    %108 = vmatpush.msra.mxu0 0.0
    %109 = vmatpush.msra.mxu0 0.0
    %110 = vmatpush.msra.mxu0 0.0
    %111 = vmatpush.msra.mxu0 0.0
    %112 = vmatpush.msra.mxu0 0.0
    %113 = vmatpush.msra.mxu0 %v55
    %114 = vmatpush.msra.mxu0 %v24
    %115 = vmatpush.msra.mxu0 %v23
    %116 = vmatmul.f32.gmra.mxu0 %v78
    %v117 = vpop.f32.mrf.mxu0
    %v118 = vadd.f32 0.0, %v117
    %119 = vdwg.mxu0
    %v120 = vmul.f32 %v52, %v52
    %v121 = vmul.f32 %v75, %v75
    %v122 = vadd.f32 %v120, %v121
    %v123 = vrsqrt.pop %v122
    %v124 = vmul.f32 %v123, %v122
    %v125 = vmul.f32 %v124, %v123
    %v126 = vmul.f32 0.5, %v125
    %v127 = vsub.f32 1.5, %v126
    %v128 = vmul.f32 %v123, %v127
    %v129 = vmul.f32 %v122, %v128
    %vm130 = vcmp.eq.f32.partialorder %v122, inf
    %v131 = vsel %vm130, %v122, %v129
    %vm132 = vcmp.eq.f32.partialorder %v122, 0.0
    %v133 = vand.u32 %v122, 2147483648
    %v134 = vsel %vm132, %v133, %v131
    %v135 = vmul.f32 %v98, %v98
    %v136 = vmul.f32 %v118, %v118
    %v137 = vadd.f32 %v135, %v136
    %v138 = vrsqrt.pop %v137
    %v139 = vmul.f32 %v138, %v137
    %v140 = vmul.f32 %v139, %v138
    %v141 = vmul.f32 0.5, %v140
    %v142 = vsub.f32 1.5, %v141
    %v143 = vmul.f32 %v138, %v142
    %v144 = vmul.f32 %v137, %v143
    %vm145 = vcmp.eq.f32.partialorder %v137, inf
    %v146 = vsel %vm145, %v137, %v144
    %vm147 = vcmp.eq.f32.partialorder %v137, 0.0
    %v148 = vand.u32 %v137, 2147483648
    %v149 = vsel %vm147, %v148, %v146
    %v150 = vsub.f32 %v134, %v149
    %v151 = vand.u32 2147483647, %v150
    %152 = vst [vmem:[#allocation2] sm:$0xff] 0.0
    %vm153 = vcmask 25600
    %v154 = vsel %vm153, %v151, 0.0
    %v155 = vrot.slane %v154, 4
    %v156 = vadd.f32 %v154, %v155
    %v157 = vrot.slane %v156, 2
    %v158 = vadd.f32 %v156, %v157
    %v159 = vrot.slane %v158, 1
    %v160 = vadd.f32 %v158, %v159
    %vm161 = vcmask 24576
    %162 = vst.msk [vmem:[#allocation2] sm:$0x1] %vm161, %v160
    // Predicated region
    $region18: #{tpu_custom_call.1} parent=1 // pred_check
      _
    $region19: #{tpu_custom_call.1} parent=1 // pred_check_branch
      %164 = sbr.rel (0) target = $region21
    $region20: #{tpu_custom_call.1} parent=1 // pred_region
      %166 = vsyncadd [#allocation3], 0
      %s168 = sshll.u32 [#allocation2], 4
      %s169 = int_to_ptr.vmem [resolvable:$true] %s168
      %s170 = sshll.u32 %s4, 4
      %s171 = int_to_ptr.hbm [resolvable:$true] %s170
      %173 = dma.vmem_to_hbm [thread:$0]  %s169, 128, %s171, [#allocation3]
    $region21: #{tpu_custom_call.1} parent=1 // pred_fallthru
      _
    // Predicated region
    $region22: #{tpu_custom_call.1} parent=1 // pred_check
      _
    $region23: #{tpu_custom_call.1} parent=1 // pred_check_branch
      %175 = sbr.rel (0) target = $region25
    $region24: #{tpu_custom_call.1} parent=1 // pred_region
      %177 = dma.done [#allocation3], 128
    $region25: #{tpu_custom_call.1} parent=1 // pred_fallthru
      _
    %178 = vsyncpa [#allocation3], 1

</llo_original>
